<compile_context>
chip_gen: v6e
topology: v6e:2x2x1
jax: 0.10.0
libtpu: 0.0.40
codegen_flags: <defaults>
</compile_context>

<pallas_src>
import functools

import jax
import jax.numpy as jnp
from jax import lax
from jax.experimental import pallas as pl
from jax.experimental.pallas import tpu as pltpu


def _round_up(x, m):
    return ((x + m - 1) // m) * m


def _detect_chip_config():
    """Chip-aware tiling knobs, computed once at import time."""
    kind = ""
    try:
        kind = jax.devices()[0].device_kind.lower()
    except Exception:
        pass
    is_v7x = ("v7" in kind) or ("7x" in kind)
    bf16_elementwise_ok = is_v7x or ("v6" in kind)     # v5e has no bf16 VPU/EUP
    try:
        vmem_cap = int(pltpu.get_tpu_info().vmem_capacity_bytes)
    except Exception:
        vmem_cap = (64 if is_v7x else 128) * 1024 * 1024
    small_vmem = vmem_cap <= 64 * 1024 * 1024          # v7x: 64 MiB per TC
    num_core_splits = 2 if is_v7x else 1               # 2 TCs only on v7x
    block_bytes = (2 if small_vmem else 4) * 1024 * 1024
    vmem_limit = (40 if small_vmem else 48) * 1024 * 1024
    return num_core_splits, block_bytes, vmem_limit, bf16_elementwise_ok


(_NUM_CORE_SPLITS, _BLOCK_BYTES_TARGET, _VMEM_LIMIT_BYTES,
 _BF16_ELEMENTWISE_OK) = _detect_chip_config()

_MAX_ROW_TILE = 512      # vreg-pressure cap for the (row_tile, 1) temporaries
_MAX_CLASS_TILE = 2048   # per-step class slab (multiple of 128)


def _masked_ce_kernel(tile_map_ref, active_ref,           # scalar prefetch (SMEM)
                      logits_ref, target_ref, mask_ref,   # inputs (VMEM blocks)
                      sum_ref, count_ref,                 # outputs (accumulators)
                      m_sc, s_sc, p_sc,                   # VMEM scratch
                      *, n_rows, n_classes, row_tile, class_tile,
                      tiles_per_core, compute_dtype):
    c = pl.program_id(0)          # core split              (parallel)
    i = pl.program_id(1)          # row tile within core    (arbitrary / reduce)
    k = pl.program_id(2)          # class tile              (arbitrary / reduce)
    nk = pl.num_programs(2)

    # Zero the per-core accumulator blocks once.
    @pl.when((i == 0) & (k == 0))
    def _init_outputs():
        sum_ref[...] = jnp.zeros_like(sum_ref)
        count_ref[...] = jnp.zeros_like(count_ref)

    pos = c * tiles_per_core + i
    # Row tiles with no unmasked token were compacted away by the wrapper:
    # inactive positions alias the previously fetched block (no fresh DMA) and
    # are skipped entirely here.
    is_active = active_ref[pos] > 0

    @pl.when(is_active)
    def _body():
        @pl.when(k == 0)
        def _init_scratch():
            m_sc[...] = jnp.full_like(m_sc, -jnp.inf)
            s_sc[...] = jnp.zeros_like(s_sc)
            p_sc[...] = jnp.zeros_like(p_sc)

        x = logits_ref[...].astype(compute_dtype)       # (row_tile, class_tile)
        tgt = target_ref[...]                           # (row_tile, 1) int32

        # (1, class_tile) iota broadcast against tgt: no (rows, C) int32 temp.
        col = k * class_tile + lax.broadcasted_iota(
            jnp.int32, (1, class_tile), 1)
        if n_classes % class_tile != 0:
            # Last class tile overhangs the vocab; neutralize garbage columns.
            neg = jnp.asarray(jnp.finfo(compute_dtype).min, compute_dtype)
            x = jnp.where(col < n_classes, x, neg)

        # ---- online logsumexp over the class axis (f32 running state) ----
        tile_max = jnp.max(x, axis=-1, keepdims=True).astype(jnp.float32)
        m_prev = m_sc[...]
        m_new = jnp.maximum(m_prev, tile_max)

        xm = x - m_new.astype(compute_dtype)            # bf16 on v6e/v7x inputs
        ex = jnp.exp(xm)
        tile_sum = jnp.sum(ex.astype(jnp.float32), axis=-1, keepdims=True)

        # Target gather: exactly one column matches -> exact in any dtype.
        picked = jnp.sum(jnp.where(col == tgt, x, jnp.zeros((), x.dtype)),
                         axis=-1, keepdims=True).astype(jnp.float32)

        alpha = jnp.exp(m_prev - m_new)           # == 0 at k == 0 (m_prev=-inf)
        s_sc[...] = s_sc[...] * alpha + tile_sum
        p_sc[...] = p_sc[...] + picked
        m_sc[...] = m_new

        # ---- finalize this row tile on its last class tile ----
        @pl.when(k == nk - 1)
        def _finalize():
            tile_idx = tile_map_ref[pos]
            lse = jnp.log(s_sc[...]) + m_sc[...]
            losses = lse - p_sc[...]                            # (row_tile, 1)
            mask_f = mask_ref[...].astype(jnp.float32)
            row_ids = tile_idx * row_tile + lax.broadcasted_iota(
                jnp.int32, (row_tile, 1), 0)
            valid = row_ids < n_rows      # cdiv-padded / duplicated tail rows
            # Keep selects (not multiplies) so garbage rows can't inject NaN.
            contrib = jnp.where(valid, losses * mask_f, 0.0)
            cnt = jnp.where(valid & (mask_f != 0.0), 1, 0)      # int32
            sum_ref[...] += jnp.sum(contrib)
            count_ref[...] += jnp.sum(cnt)


@functools.partial(jax.jit, static_argnames=("row_tile", "class_tile"))
def masked_crossentropy(logits, target, masks, row_tile=None, class_tile=None):
    """logits: (B, T, C) float; target: (B, T) int; masks: (B, T) -> scalar f32."""
    B, T, C = logits.shape
    N = B * T
    itemsize = jnp.dtype(logits.dtype).itemsize

    # ---- static tiling decisions -----------------------------------------
    if class_tile is None:
        class_tile = C if C <= _MAX_CLASS_TILE else _MAX_CLASS_TILE
    if row_tile is None:
        rt = _BLOCK_BYTES_TARGET // (class_tile * itemsize)
        rt = max(16, min(_MAX_ROW_TILE, rt))
        rt = (rt // 16) * 16
        row_tile = min(rt, _round_up(N, 16))

    nblocks = pl.cdiv(N, row_tile)
    n_class_tiles = pl.cdiv(C, class_tile)
    ncores = max(1, min(_NUM_CORE_SPLITS, nblocks))
    tiles_per_core = pl.cdiv(nblocks, ncores)
    total_pos = ncores * tiles_per_core

    # bf16 elementwise path only where the VPU/EUP are bf16-native (v6e/v7x).
    if logits.dtype == jnp.bfloat16 and _BF16_ELEMENTWISE_OK:
        compute_dtype = jnp.bfloat16
    else:
        compute_dtype = jnp.float32

    # ---- flatten (same layout as logits.view(-1, C)) ----------------------
    logits_flat = logits.reshape(N, C)                  # keep stored dtype
    target_flat = target.reshape(N, 1).astype(jnp.int32)
    masks_flat = masks.reshape(N, 1).astype(jnp.float32)

    # ---- scalar-prefetch schedule: skip fully-masked row tiles -------------
    mask_padded = jnp.pad(masks_flat.reshape(N), (0, nblocks * row_tile - N))
    tile_has_work = jnp.any(mask_padded.reshape(nblocks, row_tile) != 0.0, axis=1)
    tile_has_work = jnp.pad(tile_has_work, (0, total_pos - nblocks))
    tile_ids = jnp.arange(total_pos, dtype=jnp.int32)

    has_pc = tile_has_work.reshape(ncores, tiles_per_core)
    ids_pc = tile_ids.reshape(ncores, tiles_per_core)
    order = jnp.argsort(jnp.logical_not(has_pc).astype(jnp.int32), axis=1)
    tile_map = jnp.take_along_axis(ids_pc, order, axis=1)        # active first
    active_counts = jnp.sum(has_pc, axis=1).astype(jnp.int32)    # (ncores,)
    last_active = jnp.take_along_axis(
        tile_map, jnp.maximum(active_counts - 1, 0)[:, None], axis=1)
    pos_idx = jnp.arange(tiles_per_core, dtype=jnp.int32)[None, :]
    active_flags = (pos_idx < active_counts[:, None]).astype(jnp.int32)
    # Inactive positions alias the last active tile -> no extra HBM traffic.
    tile_map = jnp.where(active_flags > 0, tile_map, last_active)
    tile_map = jnp.minimum(tile_map, nblocks - 1).astype(jnp.int32).reshape(-1)
    active_flags = active_flags.reshape(-1)

    # ---- index maps (prefetch refs arrive as trailing positional args) -----
    def logits_block(c, i, k, tile_map_ref, active_ref):
        p = c * tiles_per_core + i
        a = active_ref[p]
        # Skipped steps pin the class index to the block fetched last, so they
        # trigger no DMA at all.
        k_eff = a * k + (1 - a) * (n_class_tiles - 1)
        return (tile_map_ref[p], k_eff)

    def row_vec_block(c, i, k, tile_map_ref, active_ref):
        return (tile_map_ref[c * tiles_per_core + i], 0)

    def acc_block(c, i, k, tile_map_ref, active_ref):
        return (c, 0, 0)

    kernel = functools.partial(
        _masked_ce_kernel, n_rows=N, n_classes=C, row_tile=row_tile,
        class_tile=class_tile, tiles_per_core=tiles_per_core,
        compute_dtype=compute_dtype)

    loss_sum, count = pl.pallas_call(
        kernel,
        out_shape=(
            jax.ShapeDtypeStruct((ncores, 8, 128), jnp.float32),
            jax.ShapeDtypeStruct((ncores, 8, 128), jnp.int32),
        ),
        grid_spec=pltpu.PrefetchScalarGridSpec(
            num_scalar_prefetch=2,
            grid=(ncores, tiles_per_core, n_class_tiles),
            in_specs=[
                pl.BlockSpec((row_tile, class_tile), logits_block),
                pl.BlockSpec((row_tile, 1), row_vec_block),
                pl.BlockSpec((row_tile, 1), row_vec_block),
            ],
            out_specs=(
                pl.BlockSpec((1, 8, 128), acc_block),
                pl.BlockSpec((1, 8, 128), acc_block),
            ),
            scratch_shapes=[
                pltpu.VMEM((row_tile, 1), jnp.float32),   # running max
                pltpu.VMEM((row_tile, 1), jnp.float32),   # running sum-exp
                pltpu.VMEM((row_tile, 1), jnp.float32),   # picked target logit
            ],
        ),
        compiler_params=pltpu.CompilerParams(
            dimension_semantics=("parallel", "arbitrary", "arbitrary"),
            vmem_limit_bytes=_VMEM_LIMIT_BYTES,
        ),
    )(tile_map, active_flags, logits_flat, target_flat, masks_flat)

    total_loss = jnp.sum(loss_sum[:, 0, 0])
    total_count = jnp.sum(count[:, 0, 0]).astype(jnp.float32)
    # Matches the PyTorch module: an all-masked batch divides by zero (inf/NaN),
    # exactly like the reference.
    # TODO(synk): guard with jnp.maximum(total_count, 1.0) if callers need a
    # defined value for fully-padded batches.
    return (total_loss / total_count).astype(jnp.float32)


def _reference(logits, target, masks):
    B, T, C = logits.shape
    lf = logits.reshape(B * T, C).astype(jnp.float32)
    lp = jax.nn.log_softmax(lf, axis=1)
    tf = target.reshape(B * T)
    losses = -jnp.take_along_axis(lp, tf[:, None], axis=1).reshape(target.shape)
    losses = losses * masks.astype(jnp.float32)
    length = jnp.sum(masks != 0)
    return jnp.sum(losses) / length


if __name__ == "__main__":
    key = jax.random.PRNGKey(0)
    k1, k2 = jax.random.split(key)

    # --- small case (matches the module docstring shapes) -------------------
    batch, max_len, num_classes = 2, 8, 32
    logits = jax.random.normal(k1, (batch, max_len, num_classes), jnp.float32)
    target = jax.random.randint(k2, (batch, max_len), 0, num_classes, jnp.int32)
    lengths = jnp.array([6, 4], jnp.int32)
    masks = (jnp.arange(max_len)[None, :] < lengths[:, None]).astype(jnp.float32)

    loss = jax.block_until_ready(masked_crossentropy(logits, target, masks))
    ref = _reference(logits, target, masks)
    assert jnp.allclose(loss, ref, rtol=1e-5, atol=1e-5), (loss, ref)

    # --- larger case: multiple row tiles, class-axis tiling with remainder
    #     (C = 2*2048 + 128) and a fully-padded sequence -> tile skipping -----
    k3, k4 = jax.random.split(k1)
    b2, t2, c2 = 4, 160, 4224            # N = 640 rows
    logits2 = jax.random.normal(k3, (b2, t2, c2), jnp.float32)
    target2 = jax.random.randint(k4, (b2, t2), 0, c2, jnp.int32)
    lengths2 = jnp.array([160, 100, 160, 0], jnp.int32)
    masks2 = (jnp.arange(t2)[None, :] < lengths2[:, None]).astype(jnp.float32)

    loss2 = jax.block_until_ready(masked_crossentropy(logits2, target2, masks2))
    ref2 = _reference(logits2, target2, masks2)
    assert jnp.allclose(loss2, ref2, rtol=1e-4, atol=1e-4), (loss2, ref2)

    print("KERNEL_OK")
</pallas_src>

<mosaic_0001>
module attributes {stable_mosaic.version = 11 : i64} {
  func.func @_masked_ce_kernel(%arg0: i32, %arg1: i32, %arg2: i32, %arg3: memref<1xi32, #tpu.memory_space<smem>>, %arg4: memref<1xi32, #tpu.memory_space<smem>>, %arg5: memref<16x32xf32, #tpu.memory_space<vmem>>, %arg6: memref<16x1xi32, #tpu.memory_space<vmem>>, %arg7: memref<16x1xf32, #tpu.memory_space<vmem>>, %arg8: memref<1x8x128xf32, #tpu.memory_space<vmem>>, %arg9: memref<1x8x128xi32, #tpu.memory_space<vmem>>, %arg10: memref<16x1xf32, #tpu.memory_space<vmem>>, %arg11: memref<16x1xf32, #tpu.memory_space<vmem>>, %arg12: memref<16x1xf32, #tpu.memory_space<vmem>>) attributes {dimension_semantics = [#tpu.dimension_semantics<parallel>, #tpu.dimension_semantics<arbitrary>, #tpu.dimension_semantics<arbitrary>], iteration_bounds = array<i64: 1, 1, 1>, scalar_prefetch = 2 : i64, scratch_operands = 3 : i64, tpu.core_type = #tpu.core_type<tc>, window_params = [{transform_indices = @transform_0, window_bounds = array<i64: 16, 32>}, {transform_indices = @transform_1, window_bounds = array<i64: 16, 1>}, {transform_indices = @transform_2, window_bounds = array<i64: 16, 1>}, {transform_indices = @transform_3, window_bounds = array<i64: 1, 8, 128>}, {transform_indices = @transform_4, window_bounds = array<i64: 1, 8, 128>}]} {
    %c0_i32 = arith.constant 0 : i32
    %0 = arith.cmpi eq, %arg1, %c0_i32 : i32
    %c0_i32_0 = arith.constant 0 : i32
    %1 = arith.cmpi eq, %arg2, %c0_i32_0 : i32
    %2 = arith.andi %0, %1 : i1
    %3 = arith.extui %2 : i1 to i32
    %c0_i32_1 = arith.constant 0 : i32
    %4 = arith.cmpi ne, %3, %c0_i32_1 : i32
    scf.if %4 {
      %cst = arith.constant 0.000000e+00 : f32
      %12 = vector.broadcast %cst : f32 to vector<1x8x128xf32>
      %c0 = arith.constant 0 : index
      %c0_4 = arith.constant 0 : index
      %c0_5 = arith.constant 0 : index
      %13 = vector.load %arg8[%c0, %c0_4, %c0_5] : memref<1x8x128xf32, #tpu.memory_space<vmem>>, vector<1x8x128xf32>
      tpu.vector_store %arg8[%c0, %c0_4, %c0_5], %12 {strides = array<i32>} : memref<1x8x128xf32, #tpu.memory_space<vmem>>, vector<1x8x128xf32>,
      %c0_i32_6 = arith.constant 0 : i32
      %14 = vector.broadcast %c0_i32_6 : i32 to vector<1x8x128xi32>
      %c0_7 = arith.constant 0 : index
      %c0_8 = arith.constant 0 : index
      %c0_9 = arith.constant 0 : index
      %15 = vector.load %arg9[%c0_7, %c0_8, %c0_9] : memref<1x8x128xi32, #tpu.memory_space<vmem>>, vector<1x8x128xi32>
      tpu.vector_store %arg9[%c0_7, %c0_8, %c0_9], %14 {strides = array<i32>} : memref<1x8x128xi32, #tpu.memory_space<vmem>>, vector<1x8x128xi32>,
    } else {
    }
    %c1_i32 = arith.constant 1 : i32
    %5 = arith.muli %arg0, %c1_i32 : i32
    %6 = arith.addi %5, %arg1 : i32
    %7 = arith.index_cast %6 : i32 to index
    %8 = memref.load %arg4[%7] : memref<1xi32, #tpu.memory_space<smem>>
    %c0_i32_2 = arith.constant 0 : i32
    %9 = arith.cmpi sgt, %8, %c0_i32_2 : i32
    %10 = arith.extui %9 : i1 to i32
    %c0_i32_3 = arith.constant 0 : i32
    %11 = arith.cmpi ne, %10, %c0_i32_3 : i32
    scf.if %11 {
      %c0_i32_4 = arith.constant 0 : i32
      %12 = arith.cmpi eq, %arg2, %c0_i32_4 : i32
      %13 = arith.extui %12 : i1 to i32
      %c0_i32_5 = arith.constant 0 : i32
      %14 = arith.cmpi ne, %13, %c0_i32_5 : i32
      scf.if %14 {
        %cst_26 = arith.constant 0xFF800000 : f32
        %50 = vector.broadcast %cst_26 : f32 to vector<16x1xf32>
        %c0_27 = arith.constant 0 : index
        %c0_28 = arith.constant 0 : index
        %51 = vector.load %arg10[%c0_27, %c0_28] : memref<16x1xf32, #tpu.memory_space<vmem>>, vector<16x1xf32>
        tpu.vector_store %arg10[%c0_27, %c0_28], %50 {strides = array<i32>} : memref<16x1xf32, #tpu.memory_space<vmem>>, vector<16x1xf32>,
        %cst_29 = arith.constant 0.000000e+00 : f32
        %52 = vector.broadcast %cst_29 : f32 to vector<16x1xf32>
        %c0_30 = arith.constant 0 : index
        %c0_31 = arith.constant 0 : index
        %53 = vector.load %arg11[%c0_30, %c0_31] : memref<16x1xf32, #tpu.memory_space<vmem>>, vector<16x1xf32>
        tpu.vector_store %arg11[%c0_30, %c0_31], %52 {strides = array<i32>} : memref<16x1xf32, #tpu.memory_space<vmem>>, vector<16x1xf32>,
        %cst_32 = arith.constant 0.000000e+00 : f32
        %54 = vector.broadcast %cst_32 : f32 to vector<16x1xf32>
        %c0_33 = arith.constant 0 : index
        %c0_34 = arith.constant 0 : index
        %55 = vector.load %arg12[%c0_33, %c0_34] : memref<16x1xf32, #tpu.memory_space<vmem>>, vector<16x1xf32>
        tpu.vector_store %arg12[%c0_33, %c0_34], %54 {strides = array<i32>} : memref<16x1xf32, #tpu.memory_space<vmem>>, vector<16x1xf32>,
      } else {
      }
      %c0 = arith.constant 0 : index
      %c0_6 = arith.constant 0 : index
      %15 = vector.load %arg5[%c0, %c0_6] : memref<16x32xf32, #tpu.memory_space<vmem>>, vector<16x32xf32>
      %c0_7 = arith.constant 0 : index
      %c0_8 = arith.constant 0 : index
      %16 = vector.load %arg6[%c0_7, %c0_8] : memref<16x1xi32, #tpu.memory_space<vmem>>, vector<16x1xi32>
      %c32_i32 = arith.constant 32 : i32
      %17 = arith.muli %arg2, %c32_i32 : i32
      %18 = tpu.iota {dimensions = array<i32: 1>} : vector<1x32xi32>
      %19 = vector.broadcast %17 : i32 to vector<1x32xi32>
      %20 = arith.addi %19, %18 : vector<1x32xi32>
      %cst = arith.constant dense<0xFF800000> : vector<16xf32>
      %21 = vector.multi_reduction <maximumf>, %15, %cst [1] : vector<16x32xf32> to vector<16xf32>
      %22 = vector.shape_cast %21 : vector<16xf32> to vector<16x1xf32>
      %c0_9 = arith.constant 0 : index
      %c0_10 = arith.constant 0 : index
      %23 = vector.load %arg10[%c0_9, %c0_10] : memref<16x1xf32, #tpu.memory_space<vmem>>, vector<16x1xf32>
      %24 = arith.maximumf %23, %22 : vector<16x1xf32>
      %25 = vector.broadcast %24 : vector<16x1xf32> to vector<16x32xf32>
      %26 = arith.subf %15, %25 : vector<16x32xf32>
      %27 = math.exp %26 : vector<16x32xf32>
      %cst_11 = arith.constant dense<0.000000e+00> : vector<16xf32>
      %28 = vector.multi_reduction <add>, %27, %cst_11 [1] : vector<16x32xf32> to vector<16xf32>
      %29 = vector.shape_cast %28 : vector<16xf32> to vector<16x1xf32>
      %30 = vector.broadcast %20 : vector<1x32xi32> to vector<16x32xi32>
      %31 = vector.broadcast %16 : vector<16x1xi32> to vector<16x32xi32>
      %32 = arith.cmpi eq, %30, %31 : vector<16x32xi32>
      %cst_12 = arith.constant 0.000000e+00 : f32
      %33 = vector.broadcast %cst_12 : f32 to vector<16x32xf32>
      %34 = arith.select %32, %15, %33 : vector<16x32xi1>, vector<16x32xf32>
      %cst_13 = arith.constant dense<0.000000e+00> : vector<16xf32>
      %35 = vector.multi_reduction <add>, %34, %cst_13 [1] : vector<16x32xf32> to vector<16xf32>
      %36 = vector.shape_cast %35 : vector<16xf32> to vector<16x1xf32>
      %37 = arith.subf %23, %24 : vector<16x1xf32>
      %38 = math.exp %37 : vector<16x1xf32>
      %c0_14 = arith.constant 0 : index
      %c0_15 = arith.constant 0 : index
      %39 = vector.load %arg11[%c0_14, %c0_15] : memref<16x1xf32, #tpu.memory_space<vmem>>, vector<16x1xf32>
      %40 = arith.mulf %39, %38 : vector<16x1xf32>
      %41 = arith.addf %40, %29 : vector<16x1xf32>
      %c0_16 = arith.constant 0 : index
      %c0_17 = arith.constant 0 : index
      %42 = vector.load %arg11[%c0_16, %c0_17] : memref<16x1xf32, #tpu.memory_space<vmem>>, vector<16x1xf32>
      tpu.vector_store %arg11[%c0_16, %c0_17], %41 {strides = array<i32>} : memref<16x1xf32, #tpu.memory_space<vmem>>, vector<16x1xf32>,
      %c0_18 = arith.constant 0 : index
      %c0_19 = arith.constant 0 : index
      %43 = vector.load %arg12[%c0_18, %c0_19] : memref<16x1xf32, #tpu.memory_space<vmem>>, vector<16x1xf32>
      %44 = arith.addf %43, %36 : vector<16x1xf32>
      %c0_20 = arith.constant 0 : index
      %c0_21 = arith.constant 0 : index
      %45 = vector.load %arg12[%c0_20, %c0_21] : memref<16x1xf32, #tpu.memory_space<vmem>>, vector<16x1xf32>
      tpu.vector_store %arg12[%c0_20, %c0_21], %44 {strides = array<i32>} : memref<16x1xf32, #tpu.memory_space<vmem>>, vector<16x1xf32>,
      %c0_22 = arith.constant 0 : index
      %c0_23 = arith.constant 0 : index
      %46 = vector.load %arg10[%c0_22, %c0_23] : memref<16x1xf32, #tpu.memory_space<vmem>>, vector<16x1xf32>
      tpu.vector_store %arg10[%c0_22, %c0_23], %24 {strides = array<i32>} : memref<16x1xf32, #tpu.memory_space<vmem>>, vector<16x1xf32>,
      %c0_i32_24 = arith.constant 0 : i32
      %47 = arith.cmpi eq, %arg2, %c0_i32_24 : i32
      %48 = arith.extui %47 : i1 to i32
      %c0_i32_25 = arith.constant 0 : i32
      %49 = arith.cmpi ne, %48, %c0_i32_25 : i32
      scf.if %49 {
        %50 = arith.index_cast %6 : i32 to index
        %51 = memref.load %arg3[%50] : memref<1xi32, #tpu.memory_space<smem>>
        %c0_26 = arith.constant 0 : index
        %c0_27 = arith.constant 0 : index
        %52 = vector.load %arg11[%c0_26, %c0_27] : memref<16x1xf32, #tpu.memory_space<vmem>>, vector<16x1xf32>
        %53 = math.log %52 : vector<16x1xf32>
        %c0_28 = arith.constant 0 : index
        %c0_29 = arith.constant 0 : index
        %54 = vector.load %arg10[%c0_28, %c0_29] : memref<16x1xf32, #tpu.memory_space<vmem>>, vector<16x1xf32>
        %55 = arith.addf %53, %54 : vector<16x1xf32>
        %c0_30 = arith.constant 0 : index
        %c0_31 = arith.constant 0 : index
        %56 = vector.load %arg12[%c0_30, %c0_31] : memref<16x1xf32, #tpu.memory_space<vmem>>, vector<16x1xf32>
        %57 = arith.subf %55, %56 : vector<16x1xf32>
        %c0_32 = arith.constant 0 : index
        %c0_33 = arith.constant 0 : index
        %58 = vector.load %arg7[%c0_32, %c0_33] : memref<16x1xf32, #tpu.memory_space<vmem>>, vector<16x1xf32>
        %c16_i32 = arith.constant 16 : i32
        %59 = arith.muli %51, %c16_i32 : i32
        %60 = tpu.iota {dimensions = array<i32: 0>} : vector<16x1xi32>
        %61 = vector.broadcast %59 : i32 to vector<16x1xi32>
        %62 = arith.addi %61, %60 : vector<16x1xi32>
        %c16_i32_34 = arith.constant 16 : i32
        %63 = vector.broadcast %c16_i32_34 : i32 to vector<16x1xi32>
        %64 = arith.cmpi slt, %62, %63 : vector<16x1xi32>
        %65 = arith.mulf %57, %58 : vector<16x1xf32>
        %cst_35 = arith.constant 0.000000e+00 : f32
        %66 = vector.broadcast %cst_35 : f32 to vector<16x1xf32>
        %67 = arith.select %64, %65, %66 : vector<16x1xi1>, vector<16x1xf32>
        %cst_36 = arith.constant 0.000000e+00 : f32
        %68 = vector.broadcast %cst_36 : f32 to vector<16x1xf32>
        %69 = arith.cmpf one, %58, %68 : vector<16x1xf32>
        %70 = arith.andi %64, %69 : vector<16x1xi1>
        %c1_i32_37 = arith.constant 1 : i32
        %c0_i32_38 = arith.constant 0 : i32
        %71 = vector.broadcast %c1_i32_37 : i32 to vector<16x1xi32>
        %72 = vector.broadcast %c0_i32_38 : i32 to vector<16x1xi32>
        %73 = arith.select %70, %71, %72 : vector<16x1xi1>, vector<16x1xi32>
        %c0_39 = arith.constant 0 : index
        %c0_40 = arith.constant 0 : index
        %c0_41 = arith.constant 0 : index
        %74 = vector.load %arg8[%c0_39, %c0_40, %c0_41] : memref<1x8x128xf32, #tpu.memory_space<vmem>>, vector<1x8x128xf32>
        %75 = vector.shape_cast %67 : vector<16x1xf32> to vector<1x16x1xf32>
        %cst_42 = arith.constant dense<0.000000e+00> : vector<1xf32>
        %76 = vector.multi_reduction <add>, %75, %cst_42 [1, 2] : vector<1x16x1xf32> to vector<1xf32>
        %77 = vector.shape_cast %76 : vector<1xf32> to vector<1x1x1xf32>
        %78 = vector.extract %77[0, 0, 0] : f32 from vector<1x1x1xf32>
        %79 = vector.broadcast %78 : f32 to vector<1x8x128xf32>
        %80 = arith.addf %74, %79 : vector<1x8x128xf32>
        %c0_43 = arith.constant 0 : index
        %c0_44 = arith.constant 0 : index
        %c0_45 = arith.constant 0 : index
        %81 = vector.load %arg8[%c0_43, %c0_44, %c0_45] : memref<1x8x128xf32, #tpu.memory_space<vmem>>, vector<1x8x128xf32>
        tpu.vector_store %arg8[%c0_43, %c0_44, %c0_45], %80 {strides = array<i32>} : memref<1x8x128xf32, #tpu.memory_space<vmem>>, vector<1x8x128xf32>,
        %c0_46 = arith.constant 0 : index
        %c0_47 = arith.constant 0 : index
        %c0_48 = arith.constant 0 : index
        %82 = vector.load %arg9[%c0_46, %c0_47, %c0_48] : memref<1x8x128xi32, #tpu.memory_space<vmem>>, vector<1x8x128xi32>
        %83 = vector.shape_cast %73 : vector<16x1xi32> to vector<1x16x1xi32>
        %cst_49 = arith.constant dense<0> : vector<1xi32>
        %84 = vector.multi_reduction <add>, %83, %cst_49 [1, 2] : vector<1x16x1xi32> to vector<1xi32>
        %85 = vector.shape_cast %84 : vector<1xi32> to vector<1x1x1xi32>
        %86 = vector.extract %85[0, 0, 0] : i32 from vector<1x1x1xi32>
        %87 = vector.broadcast %86 : i32 to vector<1x8x128xi32>
        %88 = arith.addi %82, %87 : vector<1x8x128xi32>
        %c0_50 = arith.constant 0 : index
        %c0_51 = arith.constant 0 : index
        %c0_52 = arith.constant 0 : index
        %89 = vector.load %arg9[%c0_50, %c0_51, %c0_52] : memref<1x8x128xi32, #tpu.memory_space<vmem>>, vector<1x8x128xi32>
        tpu.vector_store %arg9[%c0_50, %c0_51, %c0_52], %88 {strides = array<i32>} : memref<1x8x128xi32, #tpu.memory_space<vmem>>, vector<1x8x128xi32>,
      } else {
      }
    } else {
    }
    return
  }
  func.func @transform_0(%arg0: i32, %arg1: i32, %arg2: i32, %arg3: memref<1xi32, #tpu.memory_space<smem>>, %arg4: memref<1xi32, #tpu.memory_space<smem>>) -> (i32, i32) {
    %c1_i32 = arith.constant 1 : i32
    %0 = arith.muli %arg0, %c1_i32 : i32
    %1 = arith.addi %0, %arg1 : i32
    %2 = arith.index_cast %1 : i32 to index
    %3 = memref.load %arg4[%2] : memref<1xi32, #tpu.memory_space<smem>>
    %4 = arith.muli %3, %arg2 : i32
    %c1_i32_0 = arith.constant 1 : i32
    %5 = arith.subi %c1_i32_0, %3 : i32
    %c0_i32 = arith.constant 0 : i32
    %6 = arith.muli %5, %c0_i32 : i32
    %7 = arith.addi %4, %6 : i32
    %8 = arith.index_cast %1 : i32 to index
    %9 = memref.load %arg3[%8] : memref<1xi32, #tpu.memory_space<smem>>
    %c0_i32_1 = arith.constant 0 : i32
    return %9, %7 : i32, i32
  }
  func.func @transform_1(%arg0: i32, %arg1: i32, %arg2: i32, %arg3: memref<1xi32, #tpu.memory_space<smem>>, %arg4: memref<1xi32, #tpu.memory_space<smem>>) -> (i32, i32) {
    %c1_i32 = arith.constant 1 : i32
    %0 = arith.muli %arg0, %c1_i32 : i32
    %1 = arith.addi %0, %arg1 : i32
    %2 = arith.index_cast %1 : i32 to index
    %3 = memref.load %arg3[%2] : memref<1xi32, #tpu.memory_space<smem>>
    %c0_i32 = arith.constant 0 : i32
    %c0_i32_0 = arith.constant 0 : i32
    return %3, %c0_i32 : i32, i32
  }
  func.func @transform_2(%arg0: i32, %arg1: i32, %arg2: i32, %arg3: memref<1xi32, #tpu.memory_space<smem>>, %arg4: memref<1xi32, #tpu.memory_space<smem>>) -> (i32, i32) {
    %c1_i32 = arith.constant 1 : i32
    %0 = arith.muli %arg0, %c1_i32 : i32
    %1 = arith.addi %0, %arg1 : i32
    %2 = arith.index_cast %1 : i32 to index
    %3 = memref.load %arg3[%2] : memref<1xi32, #tpu.memory_space<smem>>
    %c0_i32 = arith.constant 0 : i32
    %c0_i32_0 = arith.constant 0 : i32
    return %3, %c0_i32 : i32, i32
  }
  func.func @transform_3(%arg0: i32, %arg1: i32, %arg2: i32, %arg3: memref<1xi32, #tpu.memory_space<smem>>, %arg4: memref<1xi32, #tpu.memory_space<smem>>) -> (i32, i32, i32) {
    %c0_i32 = arith.constant 0 : i32
    %c0_i32_0 = arith.constant 0 : i32
    %c0_i32_1 = arith.constant 0 : i32
    return %arg0, %c0_i32, %c0_i32_0 : i32, i32, i32
  }
  func.func @transform_4(%arg0: i32, %arg1: i32, %arg2: i32, %arg3: memref<1xi32, #tpu.memory_space<smem>>, %arg4: memref<1xi32, #tpu.memory_space<smem>>) -> (i32, i32, i32) {
    %c0_i32 = arith.constant 0 : i32
    %c0_i32_0 = arith.constant 0 : i32
    %c0_i32_1 = arith.constant 0 : i32
    return %arg0, %c0_i32, %c0_i32_0 : i32, i32, i32
  }
}

</mosaic_0001>

<llo_original>
// kernel: masked_crossentropy.1
$region0: #{masked_crossentropy.1}
  #allocation0 [shape = 'u32[]', space=smem, size = 0x4, offset = 0x4, fixed_abs, tag = 'smem constant byte address 0x4 - core index']
  #allocation1 [shape = 'u32[144,128]{1,0:T(1,128)}', space=vmem, size = 0x12000, scoped, tag = 'internal scratch']
  #allocation2 [shape = 'f32[16,1]{1,0:T(8,128)}', space=vmem, size = 0x2000, scoped, tag = 'scratch operand']
  #allocation3 [shape = 'f32[16,1]{1,0:T(8,128)}', space=vmem, size = 0x2000, scoped, tag = 'scratch operand']
  #allocation4 [shape = 'f32[16,1]{1,0:T(8,128)}', space=vmem, size = 0x2000, scoped, tag = 'scratch operand']
  #allocation5 [shape = 's32[1]{0}', space=sflag, size = 0x4, scoped, tag = 'scoped memory for masked_crossentropy.1']
  #allocation6 [shape = 's32[1]{0:T(128)S(6)}', space=smem, size = 0x200, scoped, tag = 'prefetched SMEM operand 0']
  #allocation7 [shape = 's32[1]{0:T(128)S(6)}', space=smem, size = 0x200, scoped, tag = 'prefetched SMEM operand 1']
  %s0 = inlined_call_operand.<no memory space> [shape: s32[1], index: 0, kind: input, shape index: {}]
  %s1 = inlined_call_operand.<no memory space> [shape: s32[1], index: 1, kind: input, shape index: {}]
  %s2 = inlined_call_operand.vmem [shape: f32[16,32], index: 2, kind: input, shape index: {}]
  %s3 = inlined_call_operand.vmem [shape: s32[16,1], index: 3, kind: input, shape index: {}]
  %s4 = inlined_call_operand.vmem [shape: f32[16,1], index: 4, kind: input, shape index: {}]
  %s5 = inlined_call_operand.vmem [shape: f32[1,8,128], index: 5, kind: output, shape index: {0}]
  %s6 = inlined_call_operand.vmem [shape: s32[1,8,128], index: 6, kind: output, shape index: {1}]
  %7 = xla_tuple %s5, %s6
  %s8 = sld [smem:[#allocation0]]
  $region46: #{masked_crossentropy.1} parent=0
    _
  %s10 = ssub.s32 1, %s8
  %s11 = scalar_select 0, %s10, %s8
  %12 = sst [smem:[#allocation6]] %s0
  %13 = sst [smem:[#allocation7]] %s1
  // Predicated region
  $region2: #{masked_crossentropy.1} parent=0 // pred_check
    _
  $region3: #{masked_crossentropy.1} parent=0 // pred_check_branch
    %15 = sbr.rel (0) target = $region5
  $region4: #{masked_crossentropy.1} parent=0 // pred_region
    %s16 = sadd.s32 0, 0
    %s17 = sld [smem:[#allocation7 + %s16]]
    %s18 = smul.u32 %s17, 0
    %s19 = sld [smem:[#allocation6 + %s16]]
    %s20 = smul.u32 2, %s19
    %p21 = scmp.lt.s32.totalorder %s20, 1
    %s22 = scalar_select %p21, %s20, 1
    %p23 = scmp.lt.s32.totalorder %s18, 0
    %s24 = scalar_select %p23, %s18, 0
    %s25 = sadd.s32 %s24, %s22
    %s26 = smul.addr %s25, 8
    %s27 = scalar_lea.vmem %s2, %s26
    %s28 = sadd.s32 0, 0
    %s29 = sld [smem:[#allocation7 + %s28]]
    %s30 = smul.u32 %s29, 0
    %s31 = sld [smem:[#allocation6 + %s28]]
    %s32 = smul.u32 2, %s31
  $region5: #{masked_crossentropy.1} parent=0 // pred_fallthru
    _
  // Predicated region
  $region6: #{masked_crossentropy.1} parent=0 // pred_check
    _
  $region7: #{masked_crossentropy.1} parent=0 // pred_check_branch
    %34 = sbr.rel (0) target = $region9
  $region8: #{masked_crossentropy.1} parent=0 // pred_region
    %s35 = sadd.s32 0, 0
    %s36 = sld [smem:[#allocation6 + %s35]]
    %s37 = smul.u32 2, %s36
    %p38 = scmp.lt.s32.totalorder %s37, 1
    %s39 = scalar_select %p38, %s37, 1
    %s40 = smul.addr %s39, 8
    %s41 = scalar_lea.vmem %s3, %s40
    %s42 = sadd.s32 0, 0
    %s43 = sld [smem:[#allocation6 + %s42]]
    %s44 = smul.u32 2, %s43
  $region9: #{masked_crossentropy.1} parent=0 // pred_fallthru
    _
  // Predicated region
  $region10: #{masked_crossentropy.1} parent=0 // pred_check
    _
  $region11: #{masked_crossentropy.1} parent=0 // pred_check_branch
    %46 = sbr.rel (0) target = $region13
  $region12: #{masked_crossentropy.1} parent=0 // pred_region
    %s47 = sadd.s32 0, 0
    %s48 = sld [smem:[#allocation6 + %s47]]
    %s49 = smul.u32 2, %s48
    %p50 = scmp.lt.s32.totalorder %s49, 1
    %s51 = scalar_select %p50, %s49, 1
    %s52 = smul.addr %s51, 8
    %s53 = scalar_lea.vmem %s4, %s52
    %s54 = sadd.s32 0, 0
    %s55 = sld [smem:[#allocation6 + %s54]]
    %s56 = smul.u32 2, %s55
  $region13: #{masked_crossentropy.1} parent=0 // pred_fallthru
    _
  %s57 = sadd.s32 0, 0
  %s58 = sld [smem:[#allocation7 + %s57]]
  %s59 = smul.u32 %s58, 0
  %s60 = sld [smem:[#allocation6 + %s57]]
  %s61 = smul.u32 2, %s60
  %p62 = scmp.lt.s32.totalorder %s61, 1
  %s63 = scalar_select %p62, %s61, 1
  %p64 = scmp.lt.s32.totalorder %s59, 0
  %s65 = scalar_select %p64, %s59, 0
  %s66 = sadd.s32 %s65, %s63
  %s67 = smul.addr %s66, 8
  %s68 = scalar_lea.vmem %s2, %s67
  %s69 = sadd.s32 0, 0
  %s70 = sld [smem:[#allocation6 + %s69]]
  %s71 = smul.u32 2, %s70
  %p72 = scmp.lt.s32.totalorder %s71, 1
  %s73 = scalar_select %p72, %s71, 1
  %s74 = smul.addr %s73, 8
  %s75 = scalar_lea.vmem %s3, %s74
  %s76 = sadd.s32 0, 0
  %s77 = sld [smem:[#allocation6 + %s76]]
  %s78 = smul.u32 2, %s77
  %p79 = scmp.lt.s32.totalorder %s78, 1
  %s80 = scalar_select %p79, %s78, 1
  %s81 = smul.addr %s80, 8
  %s82 = scalar_lea.vmem %s4, %s81
  %s83 = sadd.s32 0, 0
  %s84 = sld [smem:[#allocation7 + %s83]]
  %s85 = smul.u32 %s84, 0
  %s86 = sld [smem:[#allocation6 + %s83]]
  %s87 = smul.u32 2, %s86
  %p88 = scmp.lt.s32.totalorder %s87, 1
  %s89 = scalar_select %p88, %s87, 1
  %p90 = scmp.lt.s32.totalorder %s85, 0
  %s91 = scalar_select %p90, %s85, 0
  %s92 = sadd.s32 %s91, %s89
  %s93 = smul.addr %s92, 8
  %s94 = scalar_lea.vmem %s2, %s93
  %s95 = sadd.s32 0, 0
  %s96 = sld [smem:[#allocation7 + %s95]]
  %s97 = smul.u32 %s96, 0
  %s98 = sld [smem:[#allocation6 + %s95]]
  %s99 = smul.u32 2, %s98
  %s100 = sadd.s32 0, 0
  %s101 = sld [smem:[#allocation6 + %s100]]
  %s102 = smul.u32 2, %s101
  %p103 = scmp.lt.s32.totalorder %s102, 1
  %s104 = scalar_select %p103, %s102, 1
  %s105 = smul.addr %s104, 8
  %s106 = scalar_lea.vmem %s3, %s105
  %s107 = sadd.s32 0, 0
  %s108 = sld [smem:[#allocation6 + %s107]]
  %s109 = smul.u32 2, %s108
  %s110 = sadd.s32 0, 0
  %s111 = sld [smem:[#allocation6 + %s110]]
  %s112 = smul.u32 2, %s111
  %p113 = scmp.lt.s32.totalorder %s112, 1
  %s114 = scalar_select %p113, %s112, 1
  %s115 = smul.addr %s114, 8
  %s116 = scalar_lea.vmem %s4, %s115
  %s117 = sadd.s32 0, 0
  %s118 = sld [smem:[#allocation6 + %s117]]
  %s119 = smul.u32 2, %s118
  %p120 = scmp.eq.s32.totalorder 0, 0
  %p121 = scmp.eq.s32.totalorder 0, 0
  %p122 = pnand %p120, %p121
  %p123 = pneg %p122
  // Predicated region
  $region14: #{masked_crossentropy.1} parent=0 // pred_check
    _
  $region15: #{masked_crossentropy.1} parent=0 // pred_check_branch
    %125 = sbr.rel (%p122) target = $region17
  $region16: #{masked_crossentropy.1} parent=0 // pred_region
    %126 = vst [vmem:[%s5] sm:$0xff] 0.0
    %127 = vst [vmem:[%s6] sm:$0xff] 0
  $region17: #{masked_crossentropy.1} parent=0 // pred_fallthru
    _
  %s128 = sadd.s32 0, 0
  %s129 = sld [smem:[#allocation7 + %s128]]
  %p130 = scmp.gt.s32.totalorder %s129, 0
  // Predicated region
  $region18: #{masked_crossentropy.1} parent=0 // pred_check
    %p131 = pneg %p130
  $region19: #{masked_crossentropy.1} parent=0 // pred_check_branch
    %133 = sbr.rel (%p131) target = $region21
  $region20: #{masked_crossentropy.1} parent=0 // pred_region
    // Predicated region
    $region22: #{masked_crossentropy.1} parent=20 // pred_check
      %p134 = pneg %p121
    $region23: #{masked_crossentropy.1} parent=20 // pred_check_branch
      %136 = sbr.rel (%p134) target = $region25
    $region24: #{masked_crossentropy.1} parent=20 // pred_region
      %vm137 = vcmask 7168
      %138 = vst.msk [vmem:[#allocation2] sm:$0xff] %vm137, -inf
      %139 = vst.msk [vmem:[#allocation2 + $0x8] sm:$0xff] %vm137, -inf
      %140 = vst.msk [vmem:[#allocation3] sm:$0xff] %vm137, 0.0
      %141 = vst.msk [vmem:[#allocation3 + $0x8] sm:$0xff] %vm137, 0.0
      %142 = vst.msk [vmem:[#allocation4] sm:$0xff] %vm137, 0.0
      %143 = vst.msk [vmem:[#allocation4 + $0x8] sm:$0xff] %vm137, 0.0
    $region25: #{masked_crossentropy.1} parent=20 // pred_fallthru
      _
    %v144 = vld [vmem:[%s94] sm:$0xff]
    %v145 = vld [vmem:[%s94 + $0x8] sm:$0xff]
    %v146 = vld [vmem:[%s106] sm:$0xff]
    %v147 = vld [vmem:[%s106 + $0x8] sm:$0xff]
    %s148 = smul.u32 0, 32
    %v149 = vlaneseq
    %v150 = vand.u32 %v149, 127
    %v151 = vstv %s148
    %v152 = vadd.s32 %v151, %v150
    %vm153 = vcmask 261120
    %v154 = vsel %vm153, %v144, -inf
    %155 = vmax.xlane.f32.xlu0 %v154
    %v156 = vpop.xlane.xlu0 %155
    %v157 = vsel %vm153, %v145, -inf
    %158 = vmax.xlane.f32.xlu0 %v157
    %v159 = vpop.xlane.xlu0 %158
    %v160 = vld [vmem:[#allocation2] sm:$0xff]
    %v161 = vld [vmem:[#allocation2 + $0x8] sm:$0xff]
    %v162 = vmax.f32 %v160, %v156
    %v163 = vmax.f32 %v161, %v159
    %165 = vset.pattern.permute.xlu0 0
    %166 = vperm.xlu0 %165, %v162
    %v167 = vpop.permute.xlu0 %166
    %170 = vset.pattern.permute.xlu0 0
    %171 = vperm.xlu0 %170, %v163
    %v172 = vpop.permute.xlu0 %171
    %v174 = vsub.f32 %v144, %v167
    %v175 = vsub.f32 %v145, %v172
    %v176 = vmul.f32 %v174, 1.442695
    %v177 = vpow.pop %v176
    %v178 = vmul.f32 %v175, 1.442695
    %v179 = vpow.pop %v178
    %v180 = vsel %vm153, %v177, 0.0
    %181 = vadd.xlane.f32.xlu0 %v180
    %v182 = vpop.xlane.xlu0 %181
    %v183 = vsel %vm153, %v179, 0.0
    %184 = vadd.xlane.f32.xlu0 %v183
    %v185 = vpop.xlane.xlu0 %184
    %186 = vset.pattern.permute.xlu0 0
    %187 = vperm.xlu0 %186, %v146
    %v188 = vpop.permute.xlu0 %187
    %189 = vset.pattern.permute.xlu0 0
    %190 = vperm.xlu0 %189, %v147
    %v191 = vpop.permute.xlu0 %190
    %vm192 = vcmp.eq.s32.totalorder %v152, %v188
    %vm193 = vcmp.eq.s32.totalorder %v152, %v191
    %v194 = vsel %vm192, %v144, 0.0
    %v195 = vsel %vm193, %v145, 0.0
    %v196 = vsel %vm153, %v194, 0.0
    %197 = vadd.xlane.f32.xlu0 %v196
    %v198 = vpop.xlane.xlu0 %197
    %v199 = vsel %vm153, %v195, 0.0
    %200 = vadd.xlane.f32.xlu0 %v199
    %v201 = vpop.xlane.xlu0 %200
    %v202 = vsub.f32 %v160, %v162
    %v203 = vsub.f32 %v161, %v163
    %v204 = vmul.f32 %v202, 1.442695
    %v205 = vpow.pop %v204
    %v206 = vmul.f32 %v203, 1.442695
    %v207 = vpow.pop %v206
    %v208 = vld [vmem:[#allocation3] sm:$0xff]
    %v209 = vld [vmem:[#allocation3 + $0x8] sm:$0xff]
    %v210 = vmul.f32 %v208, %v205
    %v211 = vmul.f32 %v209, %v207
    %v212 = vadd.f32 %v210, %v182
    %v213 = vadd.f32 %v211, %v185
    %vm214 = vcmask 7168
    %215 = vst.msk [vmem:[#allocation3] sm:$0xff] %vm214, %v212
    %216 = vst.msk [vmem:[#allocation3 + $0x8] sm:$0xff] %vm214, %v213
    %v217 = vld [vmem:[#allocation4] sm:$0xff]
    %v218 = vld [vmem:[#allocation4 + $0x8] sm:$0xff]
    %v219 = vadd.f32 %v217, %v198
    %v220 = vadd.f32 %v218, %v201
    %221 = vst.msk [vmem:[#allocation4] sm:$0xff] %vm214, %v219
    %222 = vst.msk [vmem:[#allocation4 + $0x8] sm:$0xff] %vm214, %v220
    %223 = vst.msk [vmem:[#allocation2] sm:$0xff] %vm214, %v162
    %224 = vst.msk [vmem:[#allocation2 + $0x8] sm:$0xff] %vm214, %v163
    // Predicated region
    $region26: #{masked_crossentropy.1} parent=20 // pred_check
      %p225 = pneg %p121
    $region27: #{masked_crossentropy.1} parent=20 // pred_check_branch
      %227 = sbr.rel (%p225) target = $region29
    $region28: #{masked_crossentropy.1} parent=20 // pred_region
      %s228 = sld [smem:[#allocation6 + %s128]]
      %v229 = vld [vmem:[#allocation3] sm:$0xff]
      %v230 = vld [vmem:[#allocation3 + $0x8] sm:$0xff]
      %v231 = vlog2.pop %v229
      %v232 = vmul.f32 %v231, 0.6931472
      %v233 = vlog2.pop %v230
      %v234 = vmul.f32 %v233, 0.6931472
      %v235 = vld [vmem:[#allocation2] sm:$0xff]
      %v236 = vld [vmem:[#allocation2 + $0x8] sm:$0xff]
      %v237 = vadd.f32 %v232, %v235
      %v238 = vadd.f32 %v234, %v236
      %v239 = vld [vmem:[#allocation4] sm:$0xff]
      %v240 = vld [vmem:[#allocation4 + $0x8] sm:$0xff]
      %v241 = vsub.f32 %v237, %v239
      %v242 = vsub.f32 %v238, %v240
      %v243 = vld [vmem:[%s116] sm:$0xff]
      %v244 = vld [vmem:[%s116 + $0x8] sm:$0xff]
      %s245 = smul.u32 %s228, 16
      %v246 = vlaneseq
      %v247 = vshrl.u32 %v246, 7
      %v248 = vadd.s32 %v247, 8
      %v249 = vstv %s245
      %v250 = vadd.s32 %v249, %v247
      %v251 = vadd.s32 %v249, %v248
      %vm252 = vcmp.lt.s32.totalorder %v250, 16
      %vm253 = vcmp.lt.s32.totalorder %v251, 16
      %v254 = vmul.f32 %v241, %v243
      %v255 = vmul.f32 %v242, %v244
      %v256 = vsel %vm252, %v254, 0.0
      %v257 = vsel %vm253, %v255, 0.0
      %vm258 = vcmp.ne.f32.partialorder %v243, 0.0
      %vm259 = vcmp.ne.f32.partialorder %v244, 0.0
      %vm260 = vmand %vm252, %vm258
      %vm261 = vmand %vm253, %vm259
      %v262 = vsel %vm260, 1, 0
      %v263 = vsel %vm261, 1, 0
      %v264 = vld [vmem:[%s5] sm:$0xff]
      %v265 = vsel %vm214, %v256, 0.0
      %v266 = vsel %vm214, %v257, 0.0
      %v267 = vadd.f32 %v265, %v266
      %268 = vadd.xlane.f32.xlu0 %v267
      %v269 = vpop.xlane.xlu0 %268
      %v270 = vrot.slane %v269, 4
      %v271 = vadd.f32 %v269, %v270
      %v272 = vrot.slane %v271, 2
      %v273 = vadd.f32 %v271, %v272
      %v274 = vrot.slane %v273, 1
      %v275 = vadd.f32 %v273, %v274
      %s276 = vtos %v275
      %v277 = vstv %s276
      %v278 = vadd.f32 %v264, %v277
      %279 = vst [vmem:[%s5] sm:$0xff] %v278
      %v280 = vld [vmem:[%s6] sm:$0xff]
      %v281 = vsel %vm214, %v262, 0
      %v282 = vsel %vm214, %v263, 0
      %v283 = vadd.s32 %v281, %v282
      %v284 = vand.u32 %v283, 65535
      %v285 = vshrl.u32 %v283, 16
      %v286 = vcvt.s32.f32 %v284
      %v287 = vcvt.s32.f32 %v285
      %288 = vadd.xlane.f32.xlu0 %v286
      %v289 = vpop.xlane.xlu0 %288
      %290 = vadd.xlane.f32.xlu0 %v287
      %v291 = vpop.xlane.xlu0 %290
      %v292 = vcvt.f32.s32 %v289
      %v293 = vcvt.f32.s32 %v291
      %v294 = vshll.u32 %v293, 16
      %v295 = vadd.s32 %v294, %v292
      %v296 = vrot.slane %v295, 4
      %v297 = vadd.s32 %v295, %v296
      %v298 = vrot.slane %v297, 2
      %v299 = vadd.s32 %v297, %v298
      %v300 = vrot.slane %v299, 1
      %v301 = vadd.s32 %v299, %v300
      %s302 = vtos %v301
      %v303 = vstv %s302
      %v304 = vadd.s32 %v280, %v303
      %305 = vst [vmem:[%s6] sm:$0xff] %v304
    $region29: #{masked_crossentropy.1} parent=20 // pred_fallthru
      _
  $region21: #{masked_crossentropy.1} parent=0 // pred_fallthru
    _
  // Predicated region
  $region30: #{masked_crossentropy.1} parent=0 // pred_check
    _
  $region31: #{masked_crossentropy.1} parent=0 // pred_check_branch
    %307 = sbr.rel (0) target = $region33
  $region32: #{masked_crossentropy.1} parent=0 // pred_region
    _
  $region33: #{masked_crossentropy.1} parent=0 // pred_fallthru
    _
  // Predicated region
  $region34: #{masked_crossentropy.1} parent=0 // pred_check
    _
  $region35: #{masked_crossentropy.1} parent=0 // pred_check_branch
    %309 = sbr.rel (0) target = $region37
  $region36: #{masked_crossentropy.1} parent=0 // pred_region
    _
  $region37: #{masked_crossentropy.1} parent=0 // pred_fallthru
    _
  // Predicated region
  $region38: #{masked_crossentropy.1} parent=0 // pred_check
    _
  $region39: #{masked_crossentropy.1} parent=0 // pred_check_branch
    %311 = sbr.rel (0) target = $region41
  $region40: #{masked_crossentropy.1} parent=0 // pred_region
    _
  $region41: #{masked_crossentropy.1} parent=0 // pred_fallthru
    _
  // Predicated region
  $region42: #{masked_crossentropy.1} parent=0 // pred_check
    _
  $region43: #{masked_crossentropy.1} parent=0 // pred_check_branch
    %313 = sbr.rel (0) target = $region45
  $region44: #{masked_crossentropy.1} parent=0 // pred_region
    _
  $region45: #{masked_crossentropy.1} parent=0 // pred_fallthru
    _

</llo_original>
